<compile_context>
chip_gen: v7x
topology: tpu7x:2x2x1
jax: 0.10.0
libtpu: 0.0.40
codegen_flags: <defaults>
</compile_context>

<pallas_src>
import jax
import jax.numpy as jnp
from jax.experimental import pallas as pl
from jax.experimental.pallas import tpu as pltpu


_VMEM_SPEC = pl.BlockSpec(memory_space=pltpu.MemorySpace.VMEM)


# ----------------------------- fused Pallas kernel ---------------------------

def _make_decoder_kernel(n_layers, hid_dim):
    """Builds a kernel body with the layer loop unrolled at trace time."""

    def kernel(*refs):
        # inputs
        tok_ref, emb_ref, h_ref, c_ref = refs[0:4]
        w_refs = refs[4:4 + n_layers]                      # (in_l + H, 4H) each
        b_refs = refs[4 + n_layers:4 + 2 * n_layers]       # (1, 4H) each
        fcw_ref = refs[4 + 2 * n_layers]                   # (H, O)
        fcb_ref = refs[4 + 2 * n_layers + 1]               # (1, O)
        # outputs
        pred_ref, h_out_ref, c_out_ref = refs[4 + 2 * n_layers + 2:]

        H = hid_dim
        B = tok_ref.shape[0]
        V = emb_ref.shape[0]

        # ---- embedding gather via one-hot matmul (MXU), table in VMEM ----
        tok = tok_ref[...]                                           # (B, 1) i32
        vocab_ids = jax.lax.broadcasted_iota(jnp.int32, (B, V), 1)   # (B, V)
        onehot = (vocab_ids == tok).astype(jnp.float32)              # (B, V)
        x = jnp.dot(onehot, emb_ref[...],
                    preferred_element_type=jnp.float32)              # (B, E)
        # input dropout: identity (eval mode)

        # ---- multi-layer LSTM, single timestep, unrolled over layers ----
        for layer in range(n_layers):
            h_prev = h_ref[layer]                                    # (B, H)
            c_prev = c_ref[layer]                                    # (B, H)
            xh = jnp.concatenate([x, h_prev], axis=-1)               # (B, in+H)
            gates = (jnp.dot(xh, w_refs[layer][...],
                             preferred_element_type=jnp.float32)
                     + b_refs[layer][...])                           # (B, 4H)

            # full-vreg transcendentals, slice the gate blocks afterwards
            sig_all = jax.nn.sigmoid(gates)
            tanh_all = jnp.tanh(gates)
            i_g = sig_all[:, 0 * H:1 * H]
            f_g = sig_all[:, 1 * H:2 * H]
            g_g = tanh_all[:, 2 * H:3 * H]
            o_g = sig_all[:, 3 * H:4 * H]

            c_new = f_g * c_prev + i_g * g_g
            h_new = o_g * jnp.tanh(c_new)

            h_out_ref[layer] = h_new
            c_out_ref[layer] = c_new
            x = h_new  # inter-layer dropout: identity (eval mode)

        # ---- final linear head ----
        pred_ref[...] = (jnp.dot(x, fcw_ref[...],
                                 preferred_element_type=jnp.float32)
                         + fcb_ref[...])

    return kernel


def decoder_step(token_ids, hidden, cell, emb_table, w_cats, biases, fc_w, fc_b):
    """One fused decoder step. Returns (prediction, new_hidden, new_cell)."""
    n_layers, B, H = hidden.shape
    O = fc_w.shape[1]

    tok2d = token_ids.reshape(B, 1).astype(jnp.int32)
    inputs = [tok2d, emb_table, hidden, cell, *w_cats, *biases, fc_w, fc_b]

    kernel = _make_decoder_kernel(n_layers, H)
    return pl.pallas_call(
        kernel,
        out_shape=(jax.ShapeDtypeStruct((B, O), jnp.float32),
                   jax.ShapeDtypeStruct((n_layers, B, H), jnp.float32),
                   jax.ShapeDtypeStruct((n_layers, B, H), jnp.float32)),
        in_specs=[_VMEM_SPEC] * len(inputs),
        out_specs=(_VMEM_SPEC, _VMEM_SPEC, _VMEM_SPEC),
        # hidden -> new_hidden, cell -> new_cell updated in place
        input_output_aliases={2: 1, 3: 2},
    )(*inputs)


# ------------------------------ Decoder module -------------------------------

class Decoder:
    """JAX/Pallas equivalent of the PyTorch Decoder (eval-mode forward)."""

    def __init__(self, output_dim, emb_dim, hid_dim, n_layers, key):
        self.output_dim = output_dim
        self.emb_dim = emb_dim
        self.hid_dim = hid_dim
        self.n_layers = n_layers

        keys = jax.random.split(key, 1 + 4 * n_layers + 2)
        k = iter(keys)

        # nn.Embedding(output_dim, emb_dim): weight (output_dim, emb_dim)
        self.embedding = jax.random.normal(next(k), (output_dim, emb_dim),
                                           jnp.float32) * 0.1

        # nn.LSTM(emb_dim, hid_dim, n_layers): per layer, store the transposed
        # and row-concatenated weight  W_cat = [W_ih^T ; W_hh^T]  (in+H, 4H)
        # so gates = [x, h] @ W_cat + (b_ih + b_hh).  Gate order: i, f, g, o.
        self.w_cat, self.bias = [], []
        for layer in range(n_layers):
            in_dim = emb_dim if layer == 0 else hid_dim
            w_ih = jax.random.normal(next(k), (in_dim, 4 * hid_dim),
                                     jnp.float32) * 0.1
            w_hh = jax.random.normal(next(k), (hid_dim, 4 * hid_dim),
                                     jnp.float32) * 0.1
            b_ih = jax.random.normal(next(k), (4 * hid_dim,), jnp.float32) * 0.1
            b_hh = jax.random.normal(next(k), (4 * hid_dim,), jnp.float32) * 0.1
            self.w_cat.append(jnp.concatenate([w_ih, w_hh], axis=0))
            self.bias.append((b_ih + b_hh).reshape(1, 4 * hid_dim))

        # nn.Linear(hid_dim, output_dim): stored as (hid_dim, output_dim)
        self.fc_w = jax.random.normal(next(k), (hid_dim, output_dim),
                                      jnp.float32) * 0.1
        self.fc_b = (jax.random.normal(next(k), (output_dim,), jnp.float32)
                     * 0.1).reshape(1, output_dim)

    def __call__(self, token_ids, hidden, cell):
        """
        token_ids: (batch,) int32 indices           (PyTorch `input`)
        hidden:    (n_layers, batch, hid_dim) f32
        cell:      (n_layers, batch, hid_dim) f32
        returns (prediction (batch, output_dim), hidden, cell)
        """
        return decoder_step(token_ids, hidden, cell, self.embedding,
                            self.w_cat, self.bias, self.fc_w, self.fc_b)


# ----------------------------- pure-JAX reference ----------------------------

def decoder_ref(dec, token_ids, hidden, cell):
    x = dec.embedding[token_ids]
    new_h, new_c = [], []
    H = dec.hid_dim
    for layer in range(dec.n_layers):
        xh = jnp.concatenate([x, hidden[layer]], axis=-1)
        gates = xh @ dec.w_cat[layer] + dec.bias[layer]
        i = jax.nn.sigmoid(gates[:, :H])
        f = jax.nn.sigmoid(gates[:, H:2 * H])
        g = jnp.tanh(gates[:, 2 * H:3 * H])
        o = jax.nn.sigmoid(gates[:, 3 * H:])
        c_new = f * cell[layer] + i * g
        h_new = o * jnp.tanh(c_new)
        new_h.append(h_new)
        new_c.append(c_new)
        x = h_new
    pred = x @ dec.fc_w + dec.fc_b
    return pred, jnp.stack(new_h), jnp.stack(new_c)


# ---------------------------------- main --------------------------------------

if __name__ == "__main__":
    OUTPUT_DIM = 16   # vocab size
    EMB_DIM = 32
    HID_DIM = 32
    N_LAYERS = 2
    BATCH = 8

    key = jax.random.PRNGKey(0)
    k_param, k_tok, k_h, k_c = jax.random.split(key, 4)

    dec = Decoder(OUTPUT_DIM, EMB_DIM, HID_DIM, N_LAYERS, k_param)

    token_ids = jax.random.randint(k_tok, (BATCH,), 0, OUTPUT_DIM, jnp.int32)
    hidden = jax.random.normal(k_h, (N_LAYERS, BATCH, HID_DIM), jnp.float32)
    cell = jax.random.normal(k_c, (N_LAYERS, BATCH, HID_DIM), jnp.float32)

    # reference first (plain JAX), then the fused Pallas kernel
    pred_r, h_r, c_r = decoder_ref(dec, token_ids, hidden, cell)

    pred, h_out, c_out = dec(token_ids, hidden, cell)
    jax.block_until_ready((pred, h_out, c_out))

    assert pred.shape == (BATCH, OUTPUT_DIM)
    assert h_out.shape == (N_LAYERS, BATCH, HID_DIM)
    assert c_out.shape == (N_LAYERS, BATCH, HID_DIM)
    assert jnp.allclose(pred, pred_r, atol=1e-4)
    assert jnp.allclose(h_out, h_r, atol=1e-4)
    assert jnp.allclose(c_out, c_r, atol=1e-4)

    print("KERNEL_OK")
</pallas_src>

<mosaic_0001>
module attributes {stable_mosaic.version = 11 : i64} {
  func.func @kernel(%arg0: memref<8x1xi32, #tpu.memory_space<vmem>>, %arg1: memref<16x32xf32, #tpu.memory_space<vmem>>, %arg2: memref<2x8x32xf32, #tpu.memory_space<vmem>>, %arg3: memref<2x8x32xf32, #tpu.memory_space<vmem>>, %arg4: memref<64x128xf32, #tpu.memory_space<vmem>>, %arg5: memref<64x128xf32, #tpu.memory_space<vmem>>, %arg6: memref<1x128xf32, #tpu.memory_space<vmem>>, %arg7: memref<1x128xf32, #tpu.memory_space<vmem>>, %arg8: memref<32x16xf32, #tpu.memory_space<vmem>>, %arg9: memref<1x16xf32, #tpu.memory_space<vmem>>, %arg10: memref<8x16xf32, #tpu.memory_space<vmem>>, %arg11: memref<2x8x32xf32, #tpu.memory_space<vmem>>, %arg12: memref<2x8x32xf32, #tpu.memory_space<vmem>>) attributes {dimension_semantics = [], scalar_prefetch = 0 : i64, scratch_operands = 0 : i64, tpu.core_type = #tpu.core_type<tc>} {
    %c0 = arith.constant 0 : index
    %c0_0 = arith.constant 0 : index
    %0 = vector.load %arg0[%c0, %c0_0] : memref<8x1xi32, #tpu.memory_space<vmem>>, vector<8x1xi32>
    %1 = tpu.iota {dimensions = array<i32: 1>} : vector<8x16xi32>
    %2 = vector.broadcast %0 : vector<8x1xi32> to vector<8x16xi32>
    %3 = arith.cmpi eq, %1, %2 : vector<8x16xi32>
    %4 = arith.extui %3 : vector<8x16xi1> to vector<8x16xi32>
    %5 = arith.sitofp %4 : vector<8x16xi32> to vector<8x16xf32>
    %c0_1 = arith.constant 0 : index
    %c0_2 = arith.constant 0 : index
    %6 = vector.load %arg1[%c0_1, %c0_2] : memref<16x32xf32, #tpu.memory_space<vmem>>, vector<16x32xf32>
    %cst = arith.constant dense<0.000000e+00> : vector<8x32xf32>
    %7 = tpu.matmul %5, %6, %cst {dimension_numbers = #tpu.dot_dimension_numbers<[1], [0], [0], [1], [0, 0, 1, 1], [], []>} : vector<8x16xf32>, vector<16x32xf32>, vector<8x32xf32> -> vector<8x32xf32>
    %c0_3 = arith.constant 0 : index
    %c0_4 = arith.constant 0 : index
    %c0_5 = arith.constant 0 : index
    %8 = vector.load %arg2[%c0_3, %c0_4, %c0_5] : memref<2x8x32xf32, #tpu.memory_space<vmem>>, vector<1x8x32xf32>
    %9 = vector.shape_cast %8 : vector<1x8x32xf32> to vector<8x32xf32>
    %c0_6 = arith.constant 0 : index
    %c0_7 = arith.constant 0 : index
    %c0_8 = arith.constant 0 : index
    %10 = vector.load %arg3[%c0_6, %c0_7, %c0_8] : memref<2x8x32xf32, #tpu.memory_space<vmem>>, vector<1x8x32xf32>
    %11 = vector.shape_cast %10 : vector<1x8x32xf32> to vector<8x32xf32>
    %12 = tpu.concatenate %7, %9 in 1 : vector<8x32xf32>, vector<8x32xf32> -> vector<8x64xf32>
    %c0_9 = arith.constant 0 : index
    %c0_10 = arith.constant 0 : index
    %13 = vector.load %arg4[%c0_9, %c0_10] : memref<64x128xf32, #tpu.memory_space<vmem>>, vector<64x128xf32>
    %cst_11 = arith.constant dense<0.000000e+00> : vector<8x128xf32>
    %14 = tpu.matmul %12, %13, %cst_11 {dimension_numbers = #tpu.dot_dimension_numbers<[1], [0], [0], [1], [0, 0, 1, 1], [], []>} : vector<8x64xf32>, vector<64x128xf32>, vector<8x128xf32> -> vector<8x128xf32>
    %c0_12 = arith.constant 0 : index
    %c0_13 = arith.constant 0 : index
    %15 = vector.load %arg6[%c0_12, %c0_13] : memref<1x128xf32, #tpu.memory_space<vmem>>, vector<1x128xf32>
    %16 = vector.broadcast %15 : vector<1x128xf32> to vector<8x128xf32>
    %17 = arith.addf %14, %16 : vector<8x128xf32>
    %18 = arith.negf %17 : vector<8x128xf32>
    %19 = math.exp %18 : vector<8x128xf32>
    %cst_14 = arith.constant 1.000000e+00 : f32
    %20 = vector.broadcast %cst_14 : f32 to vector<8x128xf32>
    %21 = arith.addf %20, %19 : vector<8x128xf32>
    %22 = arith.divf %20, %21 : vector<8x128xf32>
    %23 = math.tanh %17 : vector<8x128xf32>
    %24 = vector.extract_strided_slice %22 {offsets = [0, 0], sizes = [8, 32], strides = [1, 1]} : vector<8x128xf32> to vector<8x32xf32>
    %25 = vector.extract_strided_slice %22 {offsets = [0, 32], sizes = [8, 32], strides = [1, 1]} : vector<8x128xf32> to vector<8x32xf32>
    %26 = vector.extract_strided_slice %23 {offsets = [0, 64], sizes = [8, 32], strides = [1, 1]} : vector<8x128xf32> to vector<8x32xf32>
    %27 = vector.extract_strided_slice %22 {offsets = [0, 96], sizes = [8, 32], strides = [1, 1]} : vector<8x128xf32> to vector<8x32xf32>
    %28 = arith.mulf %25, %11 : vector<8x32xf32>
    %29 = arith.mulf %24, %26 : vector<8x32xf32>
    %30 = arith.addf %28, %29 : vector<8x32xf32>
    %31 = math.tanh %30 : vector<8x32xf32>
    %32 = arith.mulf %27, %31 : vector<8x32xf32>
    %c0_15 = arith.constant 0 : index
    %c0_16 = arith.constant 0 : index
    %c0_17 = arith.constant 0 : index
    %33 = vector.load %arg11[%c0_15, %c0_16, %c0_17] : memref<2x8x32xf32, #tpu.memory_space<vmem>>, vector<1x8x32xf32>
    %34 = vector.shape_cast %33 : vector<1x8x32xf32> to vector<8x32xf32>
    %35 = vector.shape_cast %32 : vector<8x32xf32> to vector<1x8x32xf32>
    tpu.vector_store %arg11[%c0_15, %c0_16, %c0_17], %35 {strides = array<i32>} : memref<2x8x32xf32, #tpu.memory_space<vmem>>, vector<1x8x32xf32>,
    %c0_18 = arith.constant 0 : index
    %c0_19 = arith.constant 0 : index
    %c0_20 = arith.constant 0 : index
    %36 = vector.load %arg12[%c0_18, %c0_19, %c0_20] : memref<2x8x32xf32, #tpu.memory_space<vmem>>, vector<1x8x32xf32>
    %37 = vector.shape_cast %36 : vector<1x8x32xf32> to vector<8x32xf32>
    %38 = vector.shape_cast %30 : vector<8x32xf32> to vector<1x8x32xf32>
    tpu.vector_store %arg12[%c0_18, %c0_19, %c0_20], %38 {strides = array<i32>} : memref<2x8x32xf32, #tpu.memory_space<vmem>>, vector<1x8x32xf32>,
    %c1 = arith.constant 1 : index
    %c0_21 = arith.constant 0 : index
    %c0_22 = arith.constant 0 : index
    %39 = vector.load %arg2[%c1, %c0_21, %c0_22] : memref<2x8x32xf32, #tpu.memory_space<vmem>>, vector<1x8x32xf32>
    %40 = vector.shape_cast %39 : vector<1x8x32xf32> to vector<8x32xf32>
    %c1_23 = arith.constant 1 : index
    %c0_24 = arith.constant 0 : index
    %c0_25 = arith.constant 0 : index
    %41 = vector.load %arg3[%c1_23, %c0_24, %c0_25] : memref<2x8x32xf32, #tpu.memory_space<vmem>>, vector<1x8x32xf32>
    %42 = vector.shape_cast %41 : vector<1x8x32xf32> to vector<8x32xf32>
    %43 = tpu.concatenate %32, %40 in 1 : vector<8x32xf32>, vector<8x32xf32> -> vector<8x64xf32>
    %c0_26 = arith.constant 0 : index
    %c0_27 = arith.constant 0 : index
    %44 = vector.load %arg5[%c0_26, %c0_27] : memref<64x128xf32, #tpu.memory_space<vmem>>, vector<64x128xf32>
    %cst_28 = arith.constant dense<0.000000e+00> : vector<8x128xf32>
    %45 = tpu.matmul %43, %44, %cst_28 {dimension_numbers = #tpu.dot_dimension_numbers<[1], [0], [0], [1], [0, 0, 1, 1], [], []>} : vector<8x64xf32>, vector<64x128xf32>, vector<8x128xf32> -> vector<8x128xf32>
    %c0_29 = arith.constant 0 : index
    %c0_30 = arith.constant 0 : index
    %46 = vector.load %arg7[%c0_29, %c0_30] : memref<1x128xf32, #tpu.memory_space<vmem>>, vector<1x128xf32>
    %47 = vector.broadcast %46 : vector<1x128xf32> to vector<8x128xf32>
    %48 = arith.addf %45, %47 : vector<8x128xf32>
    %49 = arith.negf %48 : vector<8x128xf32>
    %50 = math.exp %49 : vector<8x128xf32>
    %cst_31 = arith.constant 1.000000e+00 : f32
    %51 = vector.broadcast %cst_31 : f32 to vector<8x128xf32>
    %52 = arith.addf %51, %50 : vector<8x128xf32>
    %53 = arith.divf %51, %52 : vector<8x128xf32>
    %54 = math.tanh %48 : vector<8x128xf32>
    %55 = vector.extract_strided_slice %53 {offsets = [0, 0], sizes = [8, 32], strides = [1, 1]} : vector<8x128xf32> to vector<8x32xf32>
    %56 = vector.extract_strided_slice %53 {offsets = [0, 32], sizes = [8, 32], strides = [1, 1]} : vector<8x128xf32> to vector<8x32xf32>
    %57 = vector.extract_strided_slice %54 {offsets = [0, 64], sizes = [8, 32], strides = [1, 1]} : vector<8x128xf32> to vector<8x32xf32>
    %58 = vector.extract_strided_slice %53 {offsets = [0, 96], sizes = [8, 32], strides = [1, 1]} : vector<8x128xf32> to vector<8x32xf32>
    %59 = arith.mulf %56, %42 : vector<8x32xf32>
    %60 = arith.mulf %55, %57 : vector<8x32xf32>
    %61 = arith.addf %59, %60 : vector<8x32xf32>
    %62 = math.tanh %61 : vector<8x32xf32>
    %63 = arith.mulf %58, %62 : vector<8x32xf32>
    %c1_32 = arith.constant 1 : index
    %c0_33 = arith.constant 0 : index
    %c0_34 = arith.constant 0 : index
    %64 = vector.load %arg11[%c1_32, %c0_33, %c0_34] : memref<2x8x32xf32, #tpu.memory_space<vmem>>, vector<1x8x32xf32>
    %65 = vector.shape_cast %64 : vector<1x8x32xf32> to vector<8x32xf32>
    %66 = vector.shape_cast %63 : vector<8x32xf32> to vector<1x8x32xf32>
    tpu.vector_store %arg11[%c1_32, %c0_33, %c0_34], %66 {strides = array<i32>} : memref<2x8x32xf32, #tpu.memory_space<vmem>>, vector<1x8x32xf32>,
    %c1_35 = arith.constant 1 : index
    %c0_36 = arith.constant 0 : index
    %c0_37 = arith.constant 0 : index
    %67 = vector.load %arg12[%c1_35, %c0_36, %c0_37] : memref<2x8x32xf32, #tpu.memory_space<vmem>>, vector<1x8x32xf32>
    %68 = vector.shape_cast %67 : vector<1x8x32xf32> to vector<8x32xf32>
    %69 = vector.shape_cast %61 : vector<8x32xf32> to vector<1x8x32xf32>
    tpu.vector_store %arg12[%c1_35, %c0_36, %c0_37], %69 {strides = array<i32>} : memref<2x8x32xf32, #tpu.memory_space<vmem>>, vector<1x8x32xf32>,
    %c0_38 = arith.constant 0 : index
    %c0_39 = arith.constant 0 : index
    %70 = vector.load %arg8[%c0_38, %c0_39] : memref<32x16xf32, #tpu.memory_space<vmem>>, vector<32x16xf32>
    %cst_40 = arith.constant dense<0.000000e+00> : vector<8x16xf32>
    %71 = tpu.matmul %63, %70, %cst_40 {dimension_numbers = #tpu.dot_dimension_numbers<[1], [0], [0], [1], [0, 0, 1, 1], [], []>} : vector<8x32xf32>, vector<32x16xf32>, vector<8x16xf32> -> vector<8x16xf32>
    %c0_41 = arith.constant 0 : index
    %c0_42 = arith.constant 0 : index
    %72 = vector.load %arg9[%c0_41, %c0_42] : memref<1x16xf32, #tpu.memory_space<vmem>>, vector<1x16xf32>
    %73 = vector.broadcast %72 : vector<1x16xf32> to vector<8x16xf32>
    %74 = arith.addf %71, %73 : vector<8x16xf32>
    %c0_43 = arith.constant 0 : index
    %c0_44 = arith.constant 0 : index
    %75 = vector.load %arg10[%c0_43, %c0_44] : memref<8x16xf32, #tpu.memory_space<vmem>>, vector<8x16xf32>
    tpu.vector_store %arg10[%c0_43, %c0_44], %74 {strides = array<i32>} : memref<8x16xf32, #tpu.memory_space<vmem>>, vector<8x16xf32>,
    return
  }
}

</mosaic_0001>

<llo_original>
// kernel: tpu_custom_call.1
$region0: #{tpu_custom_call.1}
  #allocation0 [shape = 'u32[]', space=smem, size = 0x4, offset = 0x4, fixed_abs, tag = 'smem constant byte address 0x4 - core index']
  #allocation1 [shape = 'u32[144,128]{1,0:T(1,128)}', space=vmem, size = 0x12000, scoped, tag = 'internal scratch']
  %s0 = inlined_call_operand.vmem [shape: s32[8,1], index: 0, kind: input, shape index: {}]
  %s1 = inlined_call_operand.vmem [shape: f32[16,32], index: 1, kind: input, shape index: {}]
  %s2 = inlined_call_operand.hbm [shape: f32[2,8,32], index: 2, kind: input, shape index: {}, may-alias: {2,11}]
  %s3 = inlined_call_operand.hbm [shape: f32[2,8,32], index: 3, kind: input, shape index: {}, may-alias: {3,12}]
  %s4 = inlined_call_operand.vmem [shape: f32[64,128], index: 4, kind: input, shape index: {}]
  %s5 = inlined_call_operand.vmem [shape: f32[64,128], index: 5, kind: input, shape index: {}]
  %s6 = inlined_call_operand.vmem [shape: f32[1,128], index: 6, kind: input, shape index: {}]
  %s7 = inlined_call_operand.hbm [shape: f32[1,128], index: 7, kind: input, shape index: {}]
  %s8 = inlined_call_operand.vmem [shape: f32[32,16], index: 8, kind: input, shape index: {}]
  %s9 = inlined_call_operand.hbm [shape: f32[1,16], index: 9, kind: input, shape index: {}]
  %s10 = inlined_call_operand.hbm [shape: f32[8,16], index: 10, kind: output, shape index: {0}]
  %s11 = inlined_call_operand.hbm [shape: f32[2,8,32], index: 11, kind: output, shape index: {1}, may-alias: {2,11}]
  %s12 = inlined_call_operand.hbm [shape: f32[2,8,32], index: 12, kind: output, shape index: {2}, may-alias: {3,12}]
  %13 = xla_tuple %s10, %s11, %s12
  %s14 = sld [smem:[#allocation0]]
  $region82: #{tpu_custom_call.1} parent=0
    _
  %s16 = ssub.s32 1, %s14
  %s17 = scalar_select 0, %s16, %s14
  $region1: #{tpu_custom_call.1} parent=0
    #allocation2 [shape = 'u8[8192]{0}', space=vmem, size = 0x2000, scoped, tag = 'input window, operand 2, single buffered']
    #allocation3 [shape = 's32[1]{0}', space=sflag, size = 0x4, scoped, tag = 'scoped memory for tpu_custom_call.1']
    #allocation4 [shape = 's32[1]{0}', space=sflag, size = 0x4, scoped, tag = 'scoped memory for tpu_custom_call.1']
    #allocation5 [shape = 'u8[8192]{0}', space=vmem, size = 0x2000, scoped, tag = 'input window, operand 3, single buffered']
    #allocation6 [shape = 's32[1]{0}', space=sflag, size = 0x4, scoped, tag = 'scoped memory for tpu_custom_call.1']
    #allocation7 [shape = 'u8[512]{0}', space=vmem, size = 0x400, scoped, tag = 'input window, operand 7, single buffered']
    #allocation8 [shape = 'u8[512]{0}', space=vmem, size = 0x400, scoped, tag = 'input window, operand 9, single buffered']
    #allocation9 [shape = 's32[1]{0}', space=sflag, size = 0x4, scoped, tag = 'scoped memory for tpu_custom_call.1']
    #allocation10 [shape = 'u8[4096]{0}', space=vmem, size = 0x1000, scoped, tag = 'output window, operand 0, single buffered']
    #allocation11 [shape = 'u8[8192]{0}', space=vmem, size = 0x2000, scoped, tag = 'output window, operand 1, single buffered']
    #allocation12 [shape = 's32[1]{0}', space=sflag, size = 0x4, scoped, tag = 'scoped memory for tpu_custom_call.1']
    #allocation13 [shape = 'u8[8192]{0}', space=vmem, size = 0x2000, scoped, tag = 'output window, operand 2, single buffered']
    %18 = vsyncpa [#allocation3], 0
    %19 = vsyncpa [#allocation6], 0
    %20 = vsyncpa [#allocation9], 0
    %21 = vsyncpa [#allocation4], 0
    %22 = vsyncpa [#allocation12], 0
    // Predicated region
    $region2: #{tpu_custom_call.1} parent=1 // pred_check
      _
    $region3: #{tpu_custom_call.1} parent=1 // pred_check_branch
      %24 = sbr.rel (0) target = $region5
    $region4: #{tpu_custom_call.1} parent=1 // pred_region
      _
    $region5: #{tpu_custom_call.1} parent=1 // pred_fallthru
      _
    // Predicated region
    $region6: #{tpu_custom_call.1} parent=1 // pred_check
      _
    $region7: #{tpu_custom_call.1} parent=1 // pred_check_branch
      %26 = sbr.rel (0) target = $region9
    $region8: #{tpu_custom_call.1} parent=1 // pred_region
      _
    $region9: #{tpu_custom_call.1} parent=1 // pred_fallthru
      _
    // Predicated region
    $region10: #{tpu_custom_call.1} parent=1 // pred_check
      _
    $region11: #{tpu_custom_call.1} parent=1 // pred_check_branch
      %28 = sbr.rel (0) target = $region13
    $region12: #{tpu_custom_call.1} parent=1 // pred_region
      %s30 = ssub.s32 256, 256
      %31 = vsyncadd [#allocation3], %s30
      %s32 = sshll.u32 [#allocation2], 4
      %s33 = int_to_ptr.vmem [resolvable:$true] %s32
      %38 = dma.hbm_to_vmem [thread:$0]  %s2, 256, %s33, [#allocation3], 128, 128, 8
    $region13: #{tpu_custom_call.1} parent=1 // pred_fallthru
      _
    // Predicated region
    $region14: #{tpu_custom_call.1} parent=1 // pred_check
      _
    $region15: #{tpu_custom_call.1} parent=1 // pred_check_branch
      %40 = sbr.rel (0) target = $region17
    $region16: #{tpu_custom_call.1} parent=1 // pred_region
      %s42 = ssub.s32 256, 256
      %43 = vsyncadd [#allocation6], %s42
      %s44 = sshll.u32 [#allocation5], 4
      %s45 = int_to_ptr.vmem [resolvable:$true] %s44
      %50 = dma.hbm_to_vmem [thread:$0]  %s3, 256, %s45, [#allocation6], 128, 128, 8
    $region17: #{tpu_custom_call.1} parent=1 // pred_fallthru
      _
    // Predicated region
    $region18: #{tpu_custom_call.1} parent=1 // pred_check
      _
    $region19: #{tpu_custom_call.1} parent=1 // pred_check_branch
      %52 = sbr.rel (0) target = $region21
    $region20: #{tpu_custom_call.1} parent=1 // pred_region
      _
    $region21: #{tpu_custom_call.1} parent=1 // pred_fallthru
      _
    // Predicated region
    $region22: #{tpu_custom_call.1} parent=1 // pred_check
      _
    $region23: #{tpu_custom_call.1} parent=1 // pred_check_branch
      %54 = sbr.rel (0) target = $region25
    $region24: #{tpu_custom_call.1} parent=1 // pred_region
      _
    $region25: #{tpu_custom_call.1} parent=1 // pred_fallthru
      _
    // Predicated region
    $region26: #{tpu_custom_call.1} parent=1 // pred_check
      _
    $region27: #{tpu_custom_call.1} parent=1 // pred_check_branch
      %56 = sbr.rel (0) target = $region29
    $region28: #{tpu_custom_call.1} parent=1 // pred_region
      _
    $region29: #{tpu_custom_call.1} parent=1 // pred_fallthru
      _
    // Predicated region
    $region30: #{tpu_custom_call.1} parent=1 // pred_check
      _
    $region31: #{tpu_custom_call.1} parent=1 // pred_check_branch
      %58 = sbr.rel (0) target = $region33
    $region32: #{tpu_custom_call.1} parent=1 // pred_region
      %s60 = ssub.s32 16, 16
      %61 = vsyncadd [#allocation6], %s60
      %s63 = sshll.u32 [#allocation7], 4
      %s64 = int_to_ptr.vmem [resolvable:$true] %s63
      %66 = dma.hbm_to_vmem [thread:$0]  %s7, 16, %s64, [#allocation6]
    $region33: #{tpu_custom_call.1} parent=1 // pred_fallthru
      _
    // Predicated region
    $region34: #{tpu_custom_call.1} parent=1 // pred_check
      _
    $region35: #{tpu_custom_call.1} parent=1 // pred_check_branch
      %68 = sbr.rel (0) target = $region37
    $region36: #{tpu_custom_call.1} parent=1 // pred_region
      _
    $region37: #{tpu_custom_call.1} parent=1 // pred_fallthru
      _
    // Predicated region
    $region38: #{tpu_custom_call.1} parent=1 // pred_check
      _
    $region39: #{tpu_custom_call.1} parent=1 // pred_check_branch
      %70 = sbr.rel (0) target = $region41
    $region40: #{tpu_custom_call.1} parent=1 // pred_region
      %s72 = ssub.s32 16, 16
      %73 = vsyncadd [#allocation9], %s72
      %s75 = sshll.u32 [#allocation8], 4
      %s76 = int_to_ptr.vmem [resolvable:$true] %s75
      %78 = dma.hbm_to_vmem [thread:$0]  %s9, 16, %s76, [#allocation9]
    $region41: #{tpu_custom_call.1} parent=1 // pred_fallthru
      _
    // Predicated region
    $region42: #{tpu_custom_call.1} parent=1 // pred_check
      _
    $region43: #{tpu_custom_call.1} parent=1 // pred_check_branch
      %80 = sbr.rel (0) target = $region45
    $region44: #{tpu_custom_call.1} parent=1 // pred_region
      %81 = dma.done [#allocation3], 256
    $region45: #{tpu_custom_call.1} parent=1 // pred_fallthru
      _
    // Predicated region
    $region46: #{tpu_custom_call.1} parent=1 // pred_check
      _
    $region47: #{tpu_custom_call.1} parent=1 // pred_check_branch
      %83 = sbr.rel (0) target = $region49
    $region48: #{tpu_custom_call.1} parent=1 // pred_region
      %84 = dma.done [#allocation6], 256
    $region49: #{tpu_custom_call.1} parent=1 // pred_fallthru
      _
    // Predicated region
    $region50: #{tpu_custom_call.1} parent=1 // pred_check
      _
    $region51: #{tpu_custom_call.1} parent=1 // pred_check_branch
      %86 = sbr.rel (0) target = $region53
    $region52: #{tpu_custom_call.1} parent=1 // pred_region
      %87 = dma.done [#allocation6], 16
    $region53: #{tpu_custom_call.1} parent=1 // pred_fallthru
      _
    // Predicated region
    $region54: #{tpu_custom_call.1} parent=1 // pred_check
      _
    $region55: #{tpu_custom_call.1} parent=1 // pred_check_branch
      %89 = sbr.rel (0) target = $region57
    $region56: #{tpu_custom_call.1} parent=1 // pred_region
      %90 = dma.done [#allocation9], 16
    $region57: #{tpu_custom_call.1} parent=1 // pred_fallthru
      _
    %v91 = vld [vmem:[%s0] sm:$0xff]
    %v92 = vlaneseq
    %v93 = vand.u32 %v92, 127
    %94 = vset.pattern.permute.xlu0 0
    %95 = vperm.xlu0 %94, %v91
    %v96 = vpop.permute.xlu0 %95
    %vm97 = vcmp.eq.s32.totalorder %v93, %v96
    %v98 = vsel %vm97, 1, 0
    %v99 = vcvt.s32.f32 %v98
    %v100 = vld [vmem:[%s1] sm:$0xff]
    %v101 = vld [vmem:[%s1 + $0x8] sm:$0xff]
    %vm102 = vcmask 130048
    %v104 = vsel %vm102, %v99, 0
    %106 = vmatprep.subr.mxu0 0.0
    %107 = vmatpush1.msra.mxu0 %v100
    %108 = vmatprep.subr.mxu0 0.0
    %109 = vmatpush1.msra.mxu0 %v101
    %110 = vmatprep.subr.mxu0 0.0
    %111 = vmatpush1.msra.mxu0 0.0
    %112 = vmatprep.subr.mxu0 0.0
    %113 = vmatpush1.msra.mxu0 0.0
    %114 = vmatprep.subr.mxu0 0.0
    %115 = vmatpush1.msra.mxu0 0.0
    %116 = vmatprep.subr.mxu0 0.0
    %117 = vmatpush1.msra.mxu0 0.0
    %118 = vmatprep.subr.mxu0 0.0
    %119 = vmatpush1.msra.mxu0 0.0
    %120 = vmatprep.subr.mxu0 0.0
    %121 = vmatpush1.msra.mxu0 0.0
    %122 = vmatprep.subr.mxu0 0.0
    %123 = vmatpush1.msra.mxu0 0.0
    %124 = vmatprep.subr.mxu0 0.0
    %125 = vmatpush1.msra.mxu0 0.0
    %126 = vmatprep.subr.mxu0 0.0
    %127 = vmatpush1.msra.mxu0 0.0
    %128 = vmatprep.subr.mxu0 0.0
    %129 = vmatpush1.msra.mxu0 0.0
    %130 = vmatprep.subr.mxu0 0.0
    %131 = vmatpush1.msra.mxu0 0.0
    %132 = vmatprep.subr.mxu0 0.0
    %133 = vmatpush1.msra.mxu0 0.0
    %134 = vmatprep.subr.mxu0 0.0
    %135 = vmatpush1.msra.mxu0 0.0
    %136 = vmatprep.subr.mxu0 0.0
    %137 = vmatpush1.msra.mxu0 0.0
    %138 = vmatprep.subr.mxu0 0.0
    %139 = vmatpush1.msra.mxu0 0.0
    %140 = vmatprep.subr.mxu0 0.0
    %141 = vmatpush1.msra.mxu0 0.0
    %142 = vmatprep.subr.mxu0 0.0
    %143 = vmatpush1.msra.mxu0 0.0
    %144 = vmatprep.subr.mxu0 0.0
    %145 = vmatpush1.msra.mxu0 0.0
    %146 = vmatprep.subr.mxu0 0.0
    %147 = vmatpush1.msra.mxu0 0.0
    %148 = vmatprep.subr.mxu0 0.0
    %149 = vmatpush1.msra.mxu0 0.0
    %150 = vmatprep.subr.mxu0 0.0
    %151 = vmatpush1.msra.mxu0 0.0
    %152 = vmatprep.subr.mxu0 0.0
    %153 = vmatpush1.msra.mxu0 0.0
    %154 = vmatprep.subr.mxu0 0.0
    %155 = vmatpush1.msra.mxu0 0.0
    %156 = vmatprep.subr.mxu0 0.0
    %157 = vmatpush1.msra.mxu0 0.0
    %158 = vmatprep.subr.mxu0 0.0
    %159 = vmatpush1.msra.mxu0 0.0
    %160 = vmatprep.subr.mxu0 0.0
    %161 = vmatpush1.msra.mxu0 0.0
    %162 = vmatprep.subr.mxu0 0.0
    %163 = vmatpush1.msra.mxu0 0.0
    %164 = vmatprep.subr.mxu0 0.0
    %165 = vmatpush1.msra.mxu0 0.0
    %166 = vmatprep.subr.mxu0 0.0
    %167 = vmatpush1.msra.mxu0 0.0
    %168 = vmatprep.subr.mxu0 0.0
    %169 = vmatpush1.msra.mxu0 0.0
    %170 = vmatprep.mubr.f32.mxu0 0.0
    %171 = vmatmul.mubr.f32.gmra.mrb[0].mxu0 %v104
    %v172 = vpop.f32.mrb[0].mxu0
    %v173 = vadd.f32 0.0, %v172
    %v174 = vpop.f32.mrb[0].mxu0
    %175 = vdwg.mxu0
    %v176 = vld [vmem:[#allocation2] sm:$0xff]
    %v177 = vld [vmem:[#allocation5] sm:$0xff]
    %179 = vrot.lane.b32.xlu0 %v176, 32
    %v180 = vpop.permute.xlu0 %179
    %vm182 = vcmask 261120
    %v183 = vsel %vm182, %v173, %v180
    %v184 = vld [vmem:[%s4] sm:$0xff]
    %v185 = vld [vmem:[%s4 + $0x8] sm:$0xff]
    %v186 = vld [vmem:[%s4 + $0x10] sm:$0xff]
    %v187 = vld [vmem:[%s4 + $0x18] sm:$0xff]
    %v188 = vld [vmem:[%s4 + $0x20] sm:$0xff]
    %v189 = vld [vmem:[%s4 + $0x28] sm:$0xff]
    %v190 = vld [vmem:[%s4 + $0x30] sm:$0xff]
    %v191 = vld [vmem:[%s4 + $0x38] sm:$0xff]
    %v192 = vld [vmem:[%s6] sm:$0x1]
    %v194 = vlaneseq
    %v195 = vshrl.u32 %v194, 7
    %v196 = vsub.s32 0, %v195
    %v197 = vrot.slane %v192, %v196
    %vm199 = vcmask 523264
    %v201 = vsel %vm199, %v183, 0
    %203 = vmatprep.subr.mxu0 0.0
    %204 = vmatpush1.msra.mxu0 %v184
    %205 = vmatprep.subr.mxu0 0.0
    %206 = vmatpush1.msra.mxu0 %v185
    %207 = vmatprep.subr.mxu0 0.0
    %208 = vmatpush1.msra.mxu0 %v186
    %209 = vmatprep.subr.mxu0 0.0
    %210 = vmatpush1.msra.mxu0 %v187
    %211 = vmatprep.subr.mxu0 0.0
    %212 = vmatpush1.msra.mxu0 %v188
    %213 = vmatprep.subr.mxu0 0.0
    %214 = vmatpush1.msra.mxu0 %v189
    %215 = vmatprep.subr.mxu0 0.0
    %216 = vmatpush1.msra.mxu0 %v190
    %217 = vmatprep.subr.mxu0 0.0
    %218 = vmatpush1.msra.mxu0 %v191
    %219 = vmatprep.subr.mxu0 0.0
    %220 = vmatpush1.msra.mxu0 0.0
    %221 = vmatprep.subr.mxu0 0.0
    %222 = vmatpush1.msra.mxu0 0.0
    %223 = vmatprep.subr.mxu0 0.0
    %224 = vmatpush1.msra.mxu0 0.0
    %225 = vmatprep.subr.mxu0 0.0
    %226 = vmatpush1.msra.mxu0 0.0
    %227 = vmatprep.subr.mxu0 0.0
    %228 = vmatpush1.msra.mxu0 0.0
    %229 = vmatprep.subr.mxu0 0.0
    %230 = vmatpush1.msra.mxu0 0.0
    %231 = vmatprep.subr.mxu0 0.0
    %232 = vmatpush1.msra.mxu0 0.0
    %233 = vmatprep.subr.mxu0 0.0
    %234 = vmatpush1.msra.mxu0 0.0
    %235 = vmatprep.subr.mxu0 0.0
    %236 = vmatpush1.msra.mxu0 0.0
    %237 = vmatprep.subr.mxu0 0.0
    %238 = vmatpush1.msra.mxu0 0.0
    %239 = vmatprep.subr.mxu0 0.0
    %240 = vmatpush1.msra.mxu0 0.0
    %241 = vmatprep.subr.mxu0 0.0
    %242 = vmatpush1.msra.mxu0 0.0
    %243 = vmatprep.subr.mxu0 0.0
    %244 = vmatpush1.msra.mxu0 0.0
    %245 = vmatprep.subr.mxu0 0.0
    %246 = vmatpush1.msra.mxu0 0.0
    %247 = vmatprep.subr.mxu0 0.0
    %248 = vmatpush1.msra.mxu0 0.0
    %249 = vmatprep.subr.mxu0 0.0
    %250 = vmatpush1.msra.mxu0 0.0
    %251 = vmatprep.subr.mxu0 0.0
    %252 = vmatpush1.msra.mxu0 0.0
    %253 = vmatprep.subr.mxu0 0.0
    %254 = vmatpush1.msra.mxu0 0.0
    %255 = vmatprep.subr.mxu0 0.0
    %256 = vmatpush1.msra.mxu0 0.0
    %257 = vmatprep.subr.mxu0 0.0
    %258 = vmatpush1.msra.mxu0 0.0
    %259 = vmatprep.subr.mxu0 0.0
    %260 = vmatpush1.msra.mxu0 0.0
    %261 = vmatprep.subr.mxu0 0.0
    %262 = vmatpush1.msra.mxu0 0.0
    %263 = vmatprep.subr.mxu0 0.0
    %264 = vmatpush1.msra.mxu0 0.0
    %265 = vmatprep.subr.mxu0 0.0
    %266 = vmatpush1.msra.mxu0 0.0
    %267 = vmatprep.mubr.f32.mxu0 0.0
    %268 = vmatmul.mubr.f32.gmra.mrb[0].mxu0 %v201
    %v269 = vpop.f32.mrb[0].mxu0
    %v270 = vadd.f32 %v197, %v269
    %v271 = vpop.f32.mrb[0].mxu0
    %272 = vdwg.mxu0
    %v273 = vxor.u32 %v270, 2147483648
    %v274 = vmul.f32 %v273, 1.442695
    %v275 = vpow.pop %v274
    %v276 = vadd.f32 %v275, 1.0
    %v277 = vrcp.pop %v276
    %v278 = vmul.f32 1.0, %v277
    %v279 = vtanh.pop %v270
    %281 = vrot.lane.b32.xlu0 %v177, 32
    %v282 = vpop.permute.xlu0 %281
    %v284 = vmul.f32 %v278, %v282
    %286 = vrot.lane.b32.xlu0 %v279, 64
    %v287 = vpop.permute.xlu0 %286
    %v289 = vmul.f32 %v278, %v287
    %291 = vrot.lane.b32.xlu0 %v289, 32
    %v292 = vpop.permute.xlu0 %291
    %v294 = vadd.f32 %v284, %v292
    %v295 = vtanh.pop %v294
    %297 = vrot.lane.b32.xlu0 %v295, 64
    %v298 = vpop.permute.xlu0 %297
    %v300 = vmul.f32 %v278, %v298
    %302 = vrot.lane.b32.xlu0 %v300, 32
    %v303 = vpop.permute.xlu0 %302
    %305 = vst.msk [vmem:[#allocation11] sm:$0xff] %vm182, %v303
    %307 = vrot.lane.b32.xlu0 %v294, 96
    %v308 = vpop.permute.xlu0 %307
    %310 = vst.msk [vmem:[#allocation13] sm:$0xff] %vm182, %v308
    %s311 = scalar_lea.vmem [#allocation2], 8
    %v312 = vld [vmem:[%s311] sm:$0xff]
    %s313 = scalar_lea.vmem [#allocation5], 8
    %v314 = vld [vmem:[%s313] sm:$0xff]
    %316 = vrot.lane.b32.xlu0 %v312, 32
    %v317 = vpop.permute.xlu0 %316
    %v319 = vsel %vm182, %v303, %v317
    %v320 = vld [vmem:[%s5] sm:$0xff]
    %v321 = vld [vmem:[%s5 + $0x8] sm:$0xff]
    %v322 = vld [vmem:[%s5 + $0x10] sm:$0xff]
    %v323 = vld [vmem:[%s5 + $0x18] sm:$0xff]
    %v324 = vld [vmem:[%s5 + $0x20] sm:$0xff]
    %v325 = vld [vmem:[%s5 + $0x28] sm:$0xff]
    %v326 = vld [vmem:[%s5 + $0x30] sm:$0xff]
    %v327 = vld [vmem:[%s5 + $0x38] sm:$0xff]
    %v328 = vld [vmem:[#allocation7] sm:$0x1]
    %v330 = vlaneseq
    %v331 = vshrl.u32 %v330, 7
    %v332 = vsub.s32 0, %v331
    %v333 = vrot.slane %v328, %v332
    %v336 = vsel %vm199, %v319, 0
    %338 = vmatprep.subr.mxu0 0.0
    %339 = vmatpush1.msra.mxu0 %v320
    %340 = vmatprep.subr.mxu0 0.0
    %341 = vmatpush1.msra.mxu0 %v321
    %342 = vmatprep.subr.mxu0 0.0
    %343 = vmatpush1.msra.mxu0 %v322
    %344 = vmatprep.subr.mxu0 0.0
    %345 = vmatpush1.msra.mxu0 %v323
    %346 = vmatprep.subr.mxu0 0.0
    %347 = vmatpush1.msra.mxu0 %v324
    %348 = vmatprep.subr.mxu0 0.0
    %349 = vmatpush1.msra.mxu0 %v325
    %350 = vmatprep.subr.mxu0 0.0
    %351 = vmatpush1.msra.mxu0 %v326
    %352 = vmatprep.subr.mxu0 0.0
    %353 = vmatpush1.msra.mxu0 %v327
    %354 = vmatprep.subr.mxu0 0.0
    %355 = vmatpush1.msra.mxu0 0.0
    %356 = vmatprep.subr.mxu0 0.0
    %357 = vmatpush1.msra.mxu0 0.0
    %358 = vmatprep.subr.mxu0 0.0
    %359 = vmatpush1.msra.mxu0 0.0
    %360 = vmatprep.subr.mxu0 0.0
    %361 = vmatpush1.msra.mxu0 0.0
    %362 = vmatprep.subr.mxu0 0.0
    %363 = vmatpush1.msra.mxu0 0.0
    %364 = vmatprep.subr.mxu0 0.0
    %365 = vmatpush1.msra.mxu0 0.0
    %366 = vmatprep.subr.mxu0 0.0
    %367 = vmatpush1.msra.mxu0 0.0
    %368 = vmatprep.subr.mxu0 0.0
    %369 = vmatpush1.msra.mxu0 0.0
    %370 = vmatprep.subr.mxu0 0.0
    %371 = vmatpush1.msra.mxu0 0.0
    %372 = vmatprep.subr.mxu0 0.0
    %373 = vmatpush1.msra.mxu0 0.0
    %374 = vmatprep.subr.mxu0 0.0
    %375 = vmatpush1.msra.mxu0 0.0
    %376 = vmatprep.subr.mxu0 0.0
    %377 = vmatpush1.msra.mxu0 0.0
    %378 = vmatprep.subr.mxu0 0.0
    %379 = vmatpush1.msra.mxu0 0.0
    %380 = vmatprep.subr.mxu0 0.0
    %381 = vmatpush1.msra.mxu0 0.0
    %382 = vmatprep.subr.mxu0 0.0
    %383 = vmatpush1.msra.mxu0 0.0
    %384 = vmatprep.subr.mxu0 0.0
    %385 = vmatpush1.msra.mxu0 0.0
    %386 = vmatprep.subr.mxu0 0.0
    %387 = vmatpush1.msra.mxu0 0.0
    %388 = vmatprep.subr.mxu0 0.0
    %389 = vmatpush1.msra.mxu0 0.0
    %390 = vmatprep.subr.mxu0 0.0
    %391 = vmatpush1.msra.mxu0 0.0
    %392 = vmatprep.subr.mxu0 0.0
    %393 = vmatpush1.msra.mxu0 0.0
    %394 = vmatprep.subr.mxu0 0.0
    %395 = vmatpush1.msra.mxu0 0.0
    %396 = vmatprep.subr.mxu0 0.0
    %397 = vmatpush1.msra.mxu0 0.0
    %398 = vmatprep.subr.mxu0 0.0
    %399 = vmatpush1.msra.mxu0 0.0
    %400 = vmatprep.subr.mxu0 0.0
    %401 = vmatpush1.msra.mxu0 0.0
    %402 = vmatprep.mubr.f32.mxu0 0.0
    %403 = vmatmul.mubr.f32.gmra.mrb[0].mxu0 %v336
    %v404 = vpop.f32.mrb[0].mxu0
    %v405 = vadd.f32 %v333, %v404
    %v406 = vpop.f32.mrb[0].mxu0
    %407 = vdwg.mxu0
    %v408 = vxor.u32 %v405, 2147483648
    %v409 = vmul.f32 %v408, 1.442695
    %v410 = vpow.pop %v409
    %v411 = vadd.f32 %v410, 1.0
    %v412 = vrcp.pop %v411
    %v413 = vmul.f32 1.0, %v412
    %v414 = vtanh.pop %v405
    %416 = vrot.lane.b32.xlu0 %v314, 32
    %v417 = vpop.permute.xlu0 %416
    %v419 = vmul.f32 %v413, %v417
    %421 = vrot.lane.b32.xlu0 %v414, 64
    %v422 = vpop.permute.xlu0 %421
    %v424 = vmul.f32 %v413, %v422
    %426 = vrot.lane.b32.xlu0 %v424, 32
    %v427 = vpop.permute.xlu0 %426
    %v429 = vadd.f32 %v419, %v427
    %v430 = vtanh.pop %v429
    %432 = vrot.lane.b32.xlu0 %v430, 64
    %v433 = vpop.permute.xlu0 %432
    %v435 = vmul.f32 %v413, %v433
    %437 = vrot.lane.b32.xlu0 %v435, 32
    %v438 = vpop.permute.xlu0 %437
    %s440 = scalar_lea.vmem [#allocation11], 8
    %441 = vst.msk [vmem:[%s440] sm:$0xff] %vm182, %v438
    %443 = vrot.lane.b32.xlu0 %v429, 96
    %v444 = vpop.permute.xlu0 %443
    %s446 = scalar_lea.vmem [#allocation13], 8
    %447 = vst.msk [vmem:[%s446] sm:$0xff] %vm182, %v444
    %v448 = vld [vmem:[%s8] sm:$0xff]
    %v449 = vld [vmem:[%s8 + $0x8] sm:$0xff]
    %v450 = vld [vmem:[%s8 + $0x10] sm:$0xff]
    %v451 = vld [vmem:[%s8 + $0x18] sm:$0xff]
    %v452 = vld [vmem:[#allocation8] sm:$0x1]
    %v454 = vlaneseq
    %v455 = vshrl.u32 %v454, 7
    %v456 = vsub.s32 0, %v455
    %v457 = vrot.slane %v452, %v456
    %v459 = vsel %vm182, %v438, 0
    %461 = vmatprep.subr.mxu0 0.0
    %462 = vmatpush1.msra.mxu0 %v448
    %463 = vmatprep.subr.mxu0 0.0
    %464 = vmatpush1.msra.mxu0 %v449
    %465 = vmatprep.subr.mxu0 0.0
    %466 = vmatpush1.msra.mxu0 %v450
    %467 = vmatprep.subr.mxu0 0.0
    %468 = vmatpush1.msra.mxu0 %v451
    %469 = vmatprep.subr.mxu0 0.0
    %470 = vmatpush1.msra.mxu0 0.0
    %471 = vmatprep.subr.mxu0 0.0
    %472 = vmatpush1.msra.mxu0 0.0
    %473 = vmatprep.subr.mxu0 0.0
    %474 = vmatpush1.msra.mxu0 0.0
    %475 = vmatprep.subr.mxu0 0.0
    %476 = vmatpush1.msra.mxu0 0.0
    %477 = vmatprep.subr.mxu0 0.0
    %478 = vmatpush1.msra.mxu0 0.0
    %479 = vmatprep.subr.mxu0 0.0
    %480 = vmatpush1.msra.mxu0 0.0
    %481 = vmatprep.subr.mxu0 0.0
    %482 = vmatpush1.msra.mxu0 0.0
    %483 = vmatprep.subr.mxu0 0.0
    %484 = vmatpush1.msra.mxu0 0.0
    %485 = vmatprep.subr.mxu0 0.0
    %486 = vmatpush1.msra.mxu0 0.0
    %487 = vmatprep.subr.mxu0 0.0
    %488 = vmatpush1.msra.mxu0 0.0
    %489 = vmatprep.subr.mxu0 0.0
    %490 = vmatpush1.msra.mxu0 0.0
    %491 = vmatprep.subr.mxu0 0.0
    %492 = vmatpush1.msra.mxu0 0.0
    %493 = vmatprep.subr.mxu0 0.0
    %494 = vmatpush1.msra.mxu0 0.0
    %495 = vmatprep.subr.mxu0 0.0
    %496 = vmatpush1.msra.mxu0 0.0
    %497 = vmatprep.subr.mxu0 0.0
    %498 = vmatpush1.msra.mxu0 0.0
    %499 = vmatprep.subr.mxu0 0.0
    %500 = vmatpush1.msra.mxu0 0.0
    %501 = vmatprep.subr.mxu0 0.0
    %502 = vmatpush1.msra.mxu0 0.0
    %503 = vmatprep.subr.mxu0 0.0
    %504 = vmatpush1.msra.mxu0 0.0
    %505 = vmatprep.subr.mxu0 0.0
    %506 = vmatpush1.msra.mxu0 0.0
    %507 = vmatprep.subr.mxu0 0.0
    %508 = vmatpush1.msra.mxu0 0.0
    %509 = vmatprep.subr.mxu0 0.0
    %510 = vmatpush1.msra.mxu0 0.0
    %511 = vmatprep.subr.mxu0 0.0
    %512 = vmatpush1.msra.mxu0 0.0
    %513 = vmatprep.subr.mxu0 0.0
    %514 = vmatpush1.msra.mxu0 0.0
    %515 = vmatprep.subr.mxu0 0.0
    %516 = vmatpush1.msra.mxu0 0.0
    %517 = vmatprep.subr.mxu0 0.0
    %518 = vmatpush1.msra.mxu0 0.0
    %519 = vmatprep.subr.mxu0 0.0
    %520 = vmatpush1.msra.mxu0 0.0
    %521 = vmatprep.subr.mxu0 0.0
    %522 = vmatpush1.msra.mxu0 0.0
    %523 = vmatprep.subr.mxu0 0.0
    %524 = vmatpush1.msra.mxu0 0.0
    %525 = vmatprep.mubr.f32.mxu0 0.0
    %526 = vmatmul.mubr.f32.gmra.mrb[0].mxu0 %v459
    %v527 = vpop.f32.mrb[0].mxu0
    %v528 = vadd.f32 %v457, %v527
    %v529 = vpop.f32.mrb[0].mxu0
    %530 = vdwg.mxu0
    %531 = vst.msk [vmem:[#allocation10] sm:$0xff] %vm102, %v528
    // Predicated region
    $region58: #{tpu_custom_call.1} parent=1 // pred_check
      _
    $region59: #{tpu_custom_call.1} parent=1 // pred_check_branch
      %533 = sbr.rel (0) target = $region61
    $region60: #{tpu_custom_call.1} parent=1 // pred_region
      %s535 = ssub.s32 128, 128
      %536 = vsyncadd [#allocation4], %s535
      %s538 = sshll.u32 [#allocation10], 4
      %s539 = int_to_ptr.vmem [resolvable:$true] %s538
      %541 = dma.vmem_to_hbm [thread:$0]  %s539, 128, %s10, [#allocation4]
    $region61: #{tpu_custom_call.1} parent=1 // pred_fallthru
      _
    // Predicated region
    $region62: #{tpu_custom_call.1} parent=1 // pred_check
      _
    $region63: #{tpu_custom_call.1} parent=1 // pred_check_branch
      %543 = sbr.rel (0) target = $region65
    $region64: #{tpu_custom_call.1} parent=1 // pred_region
      %s545 = ssub.s32 256, 256
      %546 = vsyncadd [#allocation12], %s545
      %s547 = sshll.u32 [#allocation11], 4
      %s548 = int_to_ptr.vmem [resolvable:$true] %s547
      %553 = dma.vmem_to_hbm [thread:$0]  %s548, 256, %s11, [#allocation12], 128, 128, 8
    $region65: #{tpu_custom_call.1} parent=1 // pred_fallthru
      _
    // Predicated region
    $region66: #{tpu_custom_call.1} parent=1 // pred_check
      _
    $region67: #{tpu_custom_call.1} parent=1 // pred_check_branch
      %555 = sbr.rel (0) target = $region69
    $region68: #{tpu_custom_call.1} parent=1 // pred_region
      %s557 = ssub.s32 256, 256
      %558 = vsyncadd [#allocation12], %s557
      %s559 = sshll.u32 [#allocation13], 4
      %s560 = int_to_ptr.vmem [resolvable:$true] %s559
      %565 = dma.vmem_to_hbm [thread:$0]  %s560, 256, %s12, [#allocation12], 128, 128, 8
    $region69: #{tpu_custom_call.1} parent=1 // pred_fallthru
      _
    // Predicated region
    $region70: #{tpu_custom_call.1} parent=1 // pred_check
      _
    $region71: #{tpu_custom_call.1} parent=1 // pred_check_branch
      %567 = sbr.rel (0) target = $region73
    $region72: #{tpu_custom_call.1} parent=1 // pred_region
      %568 = dma.done [#allocation4], 128
    $region73: #{tpu_custom_call.1} parent=1 // pred_fallthru
      _
    // Predicated region
    $region74: #{tpu_custom_call.1} parent=1 // pred_check
      _
    $region75: #{tpu_custom_call.1} parent=1 // pred_check_branch
      %570 = sbr.rel (0) target = $region77
    $region76: #{tpu_custom_call.1} parent=1 // pred_region
      %571 = dma.done [#allocation12], 256
    $region77: #{tpu_custom_call.1} parent=1 // pred_fallthru
      _
    // Predicated region
    $region78: #{tpu_custom_call.1} parent=1 // pred_check
      _
    $region79: #{tpu_custom_call.1} parent=1 // pred_check_branch
      %573 = sbr.rel (0) target = $region81
    $region80: #{tpu_custom_call.1} parent=1 // pred_region
      %574 = dma.done [#allocation12], 256
    $region81: #{tpu_custom_call.1} parent=1 // pred_fallthru
      _
    %575 = vsyncpa [#allocation3], 1
    %576 = vsyncpa [#allocation6], 1
    %577 = vsyncpa [#allocation9], 1
    %578 = vsyncpa [#allocation4], 1
    %579 = vsyncpa [#allocation12], 1

</llo_original>
